<compile_context>
chip_gen: v7x
topology: tpu7x:2x2x1
jax: 0.10.0
libtpu: 0.0.40
codegen_flags: <defaults>
</compile_context>

<pallas_src>
import jax
import jax.numpy as jnp
from jax import lax
from jax.experimental import pallas as pl
from jax.experimental.pallas import tpu as pltpu

BN_EPS = 1e-5


def _cross_channel_skip_fc_kernel(x_ref, w1_ref, w2_hbm, vec_ref, o_ref,
                                  w2_buf, w2_sem):
    # x_ref:   (N, F) f32, N = B*C, F = H*W
    # w1_ref:  (F, F) bf16, pre-transposed to (in_features, out_features)
    # w2_hbm:  (F, F) bf16 raw HBM ref (memory_space=pl.ANY)
    # vec_ref: (3, F) f32 = [gamma; beta; b2]
    # w2_buf:  (F, F) bf16 VMEM scratch, w2_sem: DMA semaphore

    # Kick off the w2 HBM->VMEM copy now; it overlaps matmul1 + BN + SiLU.
    w2_cp = pltpu.make_async_copy(w2_hbm, w2_buf, w2_sem)
    w2_cp.start()

    x = x_ref[...]                                   # f32 activations

    # Linear 1 on the MXU (bf16 x bf16 -> f32 accumulate). Bias omitted: it is
    # exactly cancelled by the train-mode BN mean subtraction below.
    h = jnp.dot(x.astype(jnp.bfloat16), w1_ref[...],
                preferred_element_type=jnp.float32)

    # BatchNorm1d, training mode: biased (1/N) batch statistics over the rows.
    inv_n = 1.0 / h.shape[0]
    mean = jnp.sum(h, axis=0, keepdims=True) * inv_n
    d = h - mean
    var = jnp.sum(d * d, axis=0, keepdims=True) * inv_n
    scale = vec_ref[0:1, :] * lax.rsqrt(var + BN_EPS)    # gamma * rsqrt(var+eps)
    hn = d * scale + vec_ref[1:2, :]                     # + beta

    # SiLU (f32 on VPU/EUP).
    s = hn * jax.nn.sigmoid(hn)

    # Linear 2 (+ b2) and residual skip; wait for w2 only now.
    w2_cp.wait()
    out = jnp.dot(s.astype(jnp.bfloat16), w2_buf[...],
                  preferred_element_type=jnp.float32) + vec_ref[2:3, :]
    o_ref[...] = x + out


def prepare_params(params):
    """One-time parameter prep (do NOT run per call).

    Pre-transposes the PyTorch (out_features, in_features) weights to
    (in_features, out_features) so the kernel's matmuls need no in-kernel
    transpose, and casts them to bf16 to halve weight HBM traffic.  The
    per-feature vectors stay f32.  b1 is dropped: it is mathematically dead
    under train-mode BatchNorm.
    """
    return {
        "w1t": jnp.asarray(params["w1"]).T.astype(jnp.bfloat16),
        "w2t": jnp.asarray(params["w2"]).T.astype(jnp.bfloat16),
        "vec": jnp.stack([params["gamma"], params["beta"], params["b2"]],
                         axis=0).astype(jnp.float32),
    }


@jax.jit
def cross_channel_skip_fc(x, prepared):
    """x: (B, C, H, W) float32. prepared: output of prepare_params()."""
    B, C, H, W = x.shape
    F = H * W
    N = B * C
    x_flat = x.reshape(N, F)

    vmem = pl.BlockSpec(memory_space=pltpu.MemorySpace.VMEM)
    hbm = pl.BlockSpec(memory_space=pl.ANY)      # w2 stays in HBM; manual DMA
    cost = pl.CostEstimate(
        flops=4 * N * F * F + 10 * N * F,        # two matmuls + elementwise
        transcendentals=N * F,                   # sigmoid
        bytes_accessed=2 * F * F * 2 + 2 * N * F * 4 + 3 * F * 4,
    )

    out_flat = pl.pallas_call(
        _cross_channel_skip_fc_kernel,
        out_shape=jax.ShapeDtypeStruct((N, F), jnp.float32),
        in_specs=[vmem, vmem, hbm, vmem],
        out_specs=vmem,
        scratch_shapes=[pltpu.VMEM((F, F), jnp.bfloat16),
                        pltpu.SemaphoreType.DMA(())],
        cost_estimate=cost,
    )(x_flat, prepared["w1t"], prepared["w2t"], prepared["vec"])

    return out_flat.reshape(B, C, H, W)


def init_params(key, num_features):
    """Deterministic synthetic init mirroring the PyTorch shapes.

    Linear weights are stored PyTorch-style as (out_features, in_features);
    scale ~ 1/sqrt(fan_in) like the default torch init. b1 is kept for the
    reference model only (the kernel proves it is redundant under train BN).
    """
    k1, k2, k3, k4 = jax.random.split(key, 4)
    bound = 1.0 / jnp.sqrt(jnp.float32(num_features))
    return {
        "w1": jax.random.uniform(k1, (num_features, num_features),
                                 jnp.float32, -bound, bound),
        "b1": jax.random.uniform(k2, (num_features,), jnp.float32, -bound, bound),
        "gamma": jnp.ones((num_features,), jnp.float32),   # BN weight
        "beta": jnp.zeros((num_features,), jnp.float32),   # BN bias
        "w2": jax.random.uniform(k3, (num_features, num_features),
                                 jnp.float32, -bound, bound),
        "b2": jax.random.uniform(k4, (num_features,), jnp.float32, -bound, bound),
    }


def _reference(x, params):
    """Pure-JAX reference of the PyTorch forward (train-mode BatchNorm1d)."""
    B, C, H, W = x.shape
    F = H * W
    y = x.reshape(B * C, F)
    h = y @ params["w1"].T + params["b1"]
    mean = jnp.mean(h, axis=0, keepdims=True)
    var = jnp.mean((h - mean) ** 2, axis=0, keepdims=True)  # biased
    hn = (h - mean) / jnp.sqrt(var + BN_EPS) * params["gamma"] + params["beta"]
    s = hn * jax.nn.sigmoid(hn)
    out = s @ params["w2"].T + params["b2"]
    return x + out.reshape(B, C, H, W)


if __name__ == "__main__":
    key = jax.random.PRNGKey(0)
    kx, kp = jax.random.split(key)

    # shape=(16, 16) -> num_features = 256; input (B, C, H, W) = (2, 4, 16, 16)
    B, C, H, W = 2, 4, 16, 16
    x = jax.random.normal(kx, (B, C, H, W), dtype=jnp.float32)
    params = init_params(kp, H * W)
    prepared = prepare_params(params)   # one-time: transpose + bf16 cast

    result = cross_channel_skip_fc(x, prepared)
    result = jax.block_until_ready(result)
    assert result.shape == (B, C, H, W)

    # Tight check: reference with bf16-rounded weights isolates kernel logic
    # from the (approved) weight-quantization trade-off.
    params_q = dict(params)
    params_q["w1"] = params["w1"].astype(jnp.bfloat16).astype(jnp.float32)
    params_q["w2"] = params["w2"].astype(jnp.bfloat16).astype(jnp.float32)
    ref_q = jax.block_until_ready(_reference(x, params_q))
    assert jnp.allclose(result, ref_q, atol=1.5e-2, rtol=1.5e-2)

    # End-to-end check vs the exact f32 PyTorch semantics (looser tolerance
    # reflecting the bf16 weight/operand cast).
    ref = jax.block_until_ready(_reference(x, params))
    assert jnp.allclose(result, ref, atol=5e-2, rtol=5e-2)

    print("KERNEL_OK")
</pallas_src>

<mosaic_0001>
module attributes {stable_mosaic.version = 11 : i64} {
  func.func @_cross_channel_skip_fc_kernel(%arg0: memref<8x256xf32, #tpu.memory_space<vmem>>, %arg1: memref<256x256xbf16, #tpu.memory_space<vmem>>, %arg2: memref<256x256xbf16, #tpu.memory_space<any>>, %arg3: memref<3x256xf32, #tpu.memory_space<vmem>>, %arg4: memref<8x256xf32, #tpu.memory_space<vmem>>, %arg5: memref<256x256xbf16, #tpu.memory_space<vmem>>, %arg6: memref<!tpu.dma_semaphore, #tpu.memory_space<semaphore_mem>>) attributes {dimension_semantics = [], scalar_prefetch = 0 : i64, scratch_operands = 2 : i64, tpu.core_type = #tpu.core_type<tc>} {
    tpu.enqueue_dma source(%arg2 : memref<256x256xbf16, #tpu.memory_space<any>>) target(%arg5 : memref<256x256xbf16, #tpu.memory_space<vmem>>) target_semaphore(%arg6 : memref<!tpu.dma_semaphore, #tpu.memory_space<semaphore_mem>>)
    %c0 = arith.constant 0 : index
    %c0_0 = arith.constant 0 : index
    %0 = vector.load %arg0[%c0, %c0_0] : memref<8x256xf32, #tpu.memory_space<vmem>>, vector<8x256xf32>
    %1 = arith.truncf %0 : vector<8x256xf32> to vector<8x256xbf16>
    %c0_1 = arith.constant 0 : index
    %c0_2 = arith.constant 0 : index
    %2 = vector.load %arg1[%c0_1, %c0_2] : memref<256x256xbf16, #tpu.memory_space<vmem>>, vector<256x256xbf16>
    %cst = arith.constant dense<0.000000e+00> : vector<8x256xf32>
    %3 = tpu.matmul %1, %2, %cst {dimension_numbers = #tpu.dot_dimension_numbers<[1], [0], [0], [1], [0, 0, 1, 1], [], []>} : vector<8x256xbf16>, vector<256x256xbf16>, vector<8x256xf32> -> vector<8x256xf32>
    %cst_3 = arith.constant dense<0.000000e+00> : vector<256xf32>
    %4 = vector.multi_reduction <add>, %3, %cst_3 [0] : vector<8x256xf32> to vector<256xf32>
    %5 = vector.shape_cast %4 : vector<256xf32> to vector<1x256xf32>
    %cst_4 = arith.constant 1.250000e-01 : f32
    %6 = vector.broadcast %cst_4 : f32 to vector<1x256xf32>
    %7 = arith.mulf %5, %6 : vector<1x256xf32>
    %8 = vector.broadcast %7 : vector<1x256xf32> to vector<8x256xf32>
    %9 = arith.subf %3, %8 : vector<8x256xf32>
    %10 = arith.mulf %9, %9 : vector<8x256xf32>
    %cst_5 = arith.constant dense<0.000000e+00> : vector<256xf32>
    %11 = vector.multi_reduction <add>, %10, %cst_5 [0] : vector<8x256xf32> to vector<256xf32>
    %12 = vector.shape_cast %11 : vector<256xf32> to vector<1x256xf32>
    %cst_6 = arith.constant 1.250000e-01 : f32
    %13 = vector.broadcast %cst_6 : f32 to vector<1x256xf32>
    %14 = arith.mulf %12, %13 : vector<1x256xf32>
    %c0_7 = arith.constant 0 : index
    %c0_8 = arith.constant 0 : index
    %15 = vector.load %arg3[%c0_7, %c0_8] : memref<3x256xf32, #tpu.memory_space<vmem>>, vector<1x256xf32>
    %cst_9 = arith.constant 9.99999974E-6 : f32
    %16 = vector.broadcast %cst_9 : f32 to vector<1x256xf32>
    %17 = arith.addf %14, %16 : vector<1x256xf32>
    %18 = math.rsqrt %17 : vector<1x256xf32>
    %19 = arith.mulf %15, %18 : vector<1x256xf32>
    %20 = vector.broadcast %19 : vector<1x256xf32> to vector<8x256xf32>
    %21 = arith.mulf %9, %20 : vector<8x256xf32>
    %c1 = arith.constant 1 : index
    %c0_10 = arith.constant 0 : index
    %22 = vector.load %arg3[%c1, %c0_10] : memref<3x256xf32, #tpu.memory_space<vmem>>, vector<1x256xf32>
    %23 = vector.broadcast %22 : vector<1x256xf32> to vector<8x256xf32>
    %24 = arith.addf %21, %23 : vector<8x256xf32>
    %25 = arith.negf %24 : vector<8x256xf32>
    %26 = math.exp %25 : vector<8x256xf32>
    %cst_11 = arith.constant 1.000000e+00 : f32
    %27 = vector.broadcast %cst_11 : f32 to vector<8x256xf32>
    %28 = arith.addf %27, %26 : vector<8x256xf32>
    %29 = arith.divf %27, %28 : vector<8x256xf32>
    %30 = arith.mulf %24, %29 : vector<8x256xf32>
    tpu.wait_dma2 semaphore(%arg6 : memref<!tpu.dma_semaphore, #tpu.memory_space<semaphore_mem>>) src(%arg2 : memref<256x256xbf16, #tpu.memory_space<any>>) dst(%arg5 : memref<256x256xbf16, #tpu.memory_space<vmem>>)
    %31 = arith.truncf %30 : vector<8x256xf32> to vector<8x256xbf16>
    %c0_12 = arith.constant 0 : index
    %c0_13 = arith.constant 0 : index
    %32 = vector.load %arg5[%c0_12, %c0_13] : memref<256x256xbf16, #tpu.memory_space<vmem>>, vector<256x256xbf16>
    %cst_14 = arith.constant dense<0.000000e+00> : vector<8x256xf32>
    %33 = tpu.matmul %31, %32, %cst_14 {dimension_numbers = #tpu.dot_dimension_numbers<[1], [0], [0], [1], [0, 0, 1, 1], [], []>} : vector<8x256xbf16>, vector<256x256xbf16>, vector<8x256xf32> -> vector<8x256xf32>
    %c2 = arith.constant 2 : index
    %c0_15 = arith.constant 0 : index
    %34 = vector.load %arg3[%c2, %c0_15] : memref<3x256xf32, #tpu.memory_space<vmem>>, vector<1x256xf32>
    %35 = vector.broadcast %34 : vector<1x256xf32> to vector<8x256xf32>
    %36 = arith.addf %33, %35 : vector<8x256xf32>
    %37 = arith.addf %0, %36 : vector<8x256xf32>
    %c0_16 = arith.constant 0 : index
    %c0_17 = arith.constant 0 : index
    %38 = vector.load %arg4[%c0_16, %c0_17] : memref<8x256xf32, #tpu.memory_space<vmem>>, vector<8x256xf32>
    tpu.vector_store %arg4[%c0_16, %c0_17], %37 {strides = array<i32>} : memref<8x256xf32, #tpu.memory_space<vmem>>, vector<8x256xf32>,
    return
  }
}

</mosaic_0001>

<llo_original>
// kernel: cross_channel_skip_fc.1
$region0: #{cross_channel_skip_fc.1}
  #allocation0 [shape = 'u32[]', space=smem, size = 0x4, offset = 0x4, fixed_abs, tag = 'smem constant byte address 0x4 - core index']
  #allocation1 [shape = 'u32[144,128]{1,0:T(1,128)}', space=vmem, size = 0x12000, scoped, tag = 'internal scratch']
  #allocation2 [shape = 'bf16[256,256]{1,0:T(16,128)(2,1)}', space=vmem, size = 0x20000, scoped, tag = 'scratch operand']
  #allocation3 [shape = 's32[1]{0}', space=sflag, size = 0x4, scoped, tag = 'scratch operand']
  #allocation6 [shape = 's32[]', space=sflag, size = 0x4, offset = 0, fixed_abs, tag = 'sflag constant byte address 0x0 - dummy sync flag']
  %s0 = inlined_call_operand.vmem [shape: f32[8,256], index: 0, kind: input, shape index: {}]
  %s1 = inlined_call_operand.hbm [shape: bf16[256,256], index: 1, kind: input, shape index: {}]
  %s2 = inlined_call_operand.hbm [shape: bf16[256,256], index: 2, kind: input, shape index: {}]
  %s3 = inlined_call_operand.vmem [shape: f32[3,256], index: 3, kind: input, shape index: {}]
  %s4 = inlined_call_operand.vmem [shape: f32[8,256], index: 4, kind: output, shape index: {}]
  %s5 = sld [smem:[#allocation0]]
  $region26: #{cross_channel_skip_fc.1} parent=0
    _
  %s7 = ssub.s32 1, %s5
  %s8 = scalar_select 0, %s7, %s5
  $region1: #{cross_channel_skip_fc.1} parent=0
    #allocation4 [shape = 'u8[131072]{0}', space=vmem, size = 0x20000, scoped, tag = 'input window, operand 1, single buffered']
    #allocation5 [shape = 's32[1]{0}', space=sflag, size = 0x4, scoped, tag = 'scoped memory for cross_channel_skip_fc.1']
    #allocation7 [shape = 'u32[9]{0}', space=smem, size = 0x24, scoped, tag = 'DMA stride descriptor']
    %9 = vsyncpa [#allocation5], 0
    // Predicated region
    $region2: #{cross_channel_skip_fc.1} parent=1 // pred_check
      _
    $region3: #{cross_channel_skip_fc.1} parent=1 // pred_check_branch
      %11 = sbr.rel (0) target = $region5
    $region4: #{cross_channel_skip_fc.1} parent=1 // pred_region
      _
    $region5: #{cross_channel_skip_fc.1} parent=1 // pred_fallthru
      _
    // Predicated region
    $region6: #{cross_channel_skip_fc.1} parent=1 // pred_check
      _
    $region7: #{cross_channel_skip_fc.1} parent=1 // pred_check_branch
      %13 = sbr.rel (0) target = $region9
    $region8: #{cross_channel_skip_fc.1} parent=1 // pred_region
      %s15 = ssub.s32 4096, 4096
      %16 = vsyncadd [#allocation5], %s15
      %s17 = sshll.u32 [#allocation4], 4
      %s18 = int_to_ptr.vmem [resolvable:$true] %s17
      %23 = dma.hbm_to_vmem [thread:$0]  %s1, 4096, %s18, [#allocation5], 128, 128, 8
    $region9: #{cross_channel_skip_fc.1} parent=1 // pred_fallthru
      _
    // Predicated region
    $region10: #{cross_channel_skip_fc.1} parent=1 // pred_check
      _
    $region11: #{cross_channel_skip_fc.1} parent=1 // pred_check_branch
      %25 = sbr.rel (0) target = $region13
    $region12: #{cross_channel_skip_fc.1} parent=1 // pred_region
      _
    $region13: #{cross_channel_skip_fc.1} parent=1 // pred_fallthru
      _
    // Predicated region
    $region14: #{cross_channel_skip_fc.1} parent=1 // pred_check
      _
    $region15: #{cross_channel_skip_fc.1} parent=1 // pred_check_branch
      %27 = sbr.rel (0) target = $region17
    $region16: #{cross_channel_skip_fc.1} parent=1 // pred_region
      %28 = dma.done [#allocation5], 4096
    $region17: #{cross_channel_skip_fc.1} parent=1 // pred_fallthru
      _
    %s30 = sshll.u32 1, 14
    %s31 = sxor.u32 4294967295, %s30
    %s33 = sld [smem:[#allocation0]]
    %s34 = sadd.s32 2, %s33
    %s36 = sshll.u32 7, 26
    %s37 = sxor.u32 4294967295, %s36
    %s38 = sand.u32 0, %s37
    %s39 = sshll.u32 %s34, 26
    %s40 = sor.u32 %s38, %s39
    %s41 = sshll.u32 [#allocation2], 4
    %s42 = int_to_ptr.vmem [resolvable:$true] %s41
    %45 = sst [smem:[#allocation7]] 256
    %s46 = scalar_lea.smem [#allocation7], 1
    %47 = sst [smem:[%s46]] 256
    %s48 = scalar_lea.smem [#allocation7], 2
    %49 = sst [smem:[%s48]] 2
    %s50 = scalar_lea.smem [#allocation7], 3
    %51 = sst [smem:[%s50]] 64
    %s52 = scalar_lea.smem [#allocation7], 4
    %53 = sst [smem:[%s52]] 128
    %s54 = scalar_lea.smem [#allocation7], 5
    %55 = sst [smem:[%s54]] 2
    %s56 = scalar_lea.smem [#allocation7], 6
    %57 = sst [smem:[%s56]] 128
    %s58 = scalar_lea.smem [#allocation7], 7
    %59 = sst [smem:[%s58]] 64
    %s60 = scalar_lea.smem [#allocation7], 8
    %61 = sst [smem:[%s60]] 4
    %63 = dma.general %s2, 4096, %s42, [#allocation3], [#allocation6], [#allocation7], %s40, 0
    %v64 = vld [vmem:[%s0] sm:$0xff]
    %v65 = vld [vmem:[%s0 + $0x8] sm:$0xff]
    %v66 = vpack.c.bf16 %v64, %v64
    %v67 = vpack.c.bf16 %v65, %v65
    %v68 = vld [vmem:[#allocation4] sm:$0xff]
    %v69 = vld [vmem:[#allocation4 + $0x8] sm:$0xff]
    %v70 = vld [vmem:[#allocation4 + $0x10] sm:$0xff]
    %v71 = vld [vmem:[#allocation4 + $0x18] sm:$0xff]
    %v72 = vld [vmem:[#allocation4 + $0x20] sm:$0xff]
    %v73 = vld [vmem:[#allocation4 + $0x28] sm:$0xff]
    %v74 = vld [vmem:[#allocation4 + $0x30] sm:$0xff]
    %v75 = vld [vmem:[#allocation4 + $0x38] sm:$0xff]
    %v76 = vld [vmem:[#allocation4 + $0x40] sm:$0xff]
    %v77 = vld [vmem:[#allocation4 + $0x48] sm:$0xff]
    %v78 = vld [vmem:[#allocation4 + $0x50] sm:$0xff]
    %v79 = vld [vmem:[#allocation4 + $0x58] sm:$0xff]
    %v80 = vld [vmem:[#allocation4 + $0x60] sm:$0xff]
    %v81 = vld [vmem:[#allocation4 + $0x68] sm:$0xff]
    %v82 = vld [vmem:[#allocation4 + $0x70] sm:$0xff]
    %v83 = vld [vmem:[#allocation4 + $0x78] sm:$0xff]
    %v84 = vld [vmem:[#allocation4 + $0x80] sm:$0xff]
    %v85 = vld [vmem:[#allocation4 + $0x88] sm:$0xff]
    %v86 = vld [vmem:[#allocation4 + $0x90] sm:$0xff]
    %v87 = vld [vmem:[#allocation4 + $0x98] sm:$0xff]
    %v88 = vld [vmem:[#allocation4 + $0xa0] sm:$0xff]
    %v89 = vld [vmem:[#allocation4 + $0xa8] sm:$0xff]
    %v90 = vld [vmem:[#allocation4 + $0xb0] sm:$0xff]
    %v91 = vld [vmem:[#allocation4 + $0xb8] sm:$0xff]
    %v92 = vld [vmem:[#allocation4 + $0xc0] sm:$0xff]
    %v93 = vld [vmem:[#allocation4 + $0xc8] sm:$0xff]
    %v94 = vld [vmem:[#allocation4 + $0xd0] sm:$0xff]
    %v95 = vld [vmem:[#allocation4 + $0xd8] sm:$0xff]
    %v96 = vld [vmem:[#allocation4 + $0xe0] sm:$0xff]
    %v97 = vld [vmem:[#allocation4 + $0xe8] sm:$0xff]
    %v98 = vld [vmem:[#allocation4 + $0xf0] sm:$0xff]
    %v99 = vld [vmem:[#allocation4 + $0xf8] sm:$0xff]
    %v132 = vunpack.c.l.b16 %v68
    %v133 = vunpack.c.h.b16 %v68
    %v134 = vunpack.c.l.b16 %v69
    %v135 = vunpack.c.h.b16 %v69
    %v136 = vunpack.c.l.b16 %v70
    %v137 = vunpack.c.h.b16 %v70
    %v138 = vunpack.c.l.b16 %v71
    %v139 = vunpack.c.h.b16 %v71
    %v140 = vunpack.c.l.b16 %v72
    %v141 = vunpack.c.h.b16 %v72
    %v142 = vunpack.c.l.b16 %v73
    %v143 = vunpack.c.h.b16 %v73
    %v144 = vunpack.c.l.b16 %v74
    %v145 = vunpack.c.h.b16 %v74
    %v146 = vunpack.c.l.b16 %v75
    %v147 = vunpack.c.h.b16 %v75
    %v148 = vunpack.c.l.b16 %v76
    %v149 = vunpack.c.h.b16 %v76
    %v150 = vunpack.c.l.b16 %v77
    %v151 = vunpack.c.h.b16 %v77
    %v152 = vunpack.c.l.b16 %v78
    %v153 = vunpack.c.h.b16 %v78
    %v154 = vunpack.c.l.b16 %v79
    %v155 = vunpack.c.h.b16 %v79
    %v156 = vunpack.c.l.b16 %v80
    %v157 = vunpack.c.h.b16 %v80
    %v158 = vunpack.c.l.b16 %v81
    %v159 = vunpack.c.h.b16 %v81
    %v160 = vunpack.c.l.b16 %v82
    %v161 = vunpack.c.h.b16 %v82
    %v162 = vunpack.c.l.b16 %v83
    %v163 = vunpack.c.h.b16 %v83
    %v164 = vunpack.c.l.b16 %v84
    %v165 = vunpack.c.h.b16 %v84
    %v166 = vunpack.c.l.b16 %v85
    %v167 = vunpack.c.h.b16 %v85
    %v168 = vunpack.c.l.b16 %v86
    %v169 = vunpack.c.h.b16 %v86
    %v170 = vunpack.c.l.b16 %v87
    %v171 = vunpack.c.h.b16 %v87
    %v172 = vunpack.c.l.b16 %v88
    %v173 = vunpack.c.h.b16 %v88
    %v174 = vunpack.c.l.b16 %v89
    %v175 = vunpack.c.h.b16 %v89
    %v176 = vunpack.c.l.b16 %v90
    %v177 = vunpack.c.h.b16 %v90
    %v178 = vunpack.c.l.b16 %v91
    %v179 = vunpack.c.h.b16 %v91
    %v180 = vunpack.c.l.b16 %v92
    %v181 = vunpack.c.h.b16 %v92
    %v182 = vunpack.c.l.b16 %v93
    %v183 = vunpack.c.h.b16 %v93
    %v184 = vunpack.c.l.b16 %v94
    %v185 = vunpack.c.h.b16 %v94
    %v186 = vunpack.c.l.b16 %v95
    %v187 = vunpack.c.h.b16 %v95
    %v188 = vunpack.c.l.b16 %v96
    %v189 = vunpack.c.h.b16 %v96
    %v190 = vunpack.c.l.b16 %v97
    %v191 = vunpack.c.h.b16 %v97
    %v192 = vunpack.c.l.b16 %v98
    %v193 = vunpack.c.h.b16 %v98
    %v194 = vunpack.c.l.b16 %v99
    %v195 = vunpack.c.h.b16 %v99
    %v196 = vpack.c.b16 %v134, %v132
    %v197 = vpack.c.b16 %v135, %v133
    %v198 = vpack.c.b16 %v138, %v136
    %v199 = vpack.c.b16 %v139, %v137
    %v200 = vpack.c.b16 %v142, %v140
    %v201 = vpack.c.b16 %v143, %v141
    %v202 = vpack.c.b16 %v146, %v144
    %v203 = vpack.c.b16 %v147, %v145
    %v204 = vpack.c.b16 %v150, %v148
    %v205 = vpack.c.b16 %v151, %v149
    %v206 = vpack.c.b16 %v154, %v152
    %v207 = vpack.c.b16 %v155, %v153
    %v208 = vpack.c.b16 %v158, %v156
    %v209 = vpack.c.b16 %v159, %v157
    %v210 = vpack.c.b16 %v162, %v160
    %v211 = vpack.c.b16 %v163, %v161
    %v212 = vpack.c.b16 %v166, %v164
    %v213 = vpack.c.b16 %v167, %v165
    %v214 = vpack.c.b16 %v170, %v168
    %v215 = vpack.c.b16 %v171, %v169
    %v216 = vpack.c.b16 %v174, %v172
    %v217 = vpack.c.b16 %v175, %v173
    %v218 = vpack.c.b16 %v178, %v176
    %v219 = vpack.c.b16 %v179, %v177
    %v220 = vpack.c.b16 %v182, %v180
    %v221 = vpack.c.b16 %v183, %v181
    %v222 = vpack.c.b16 %v186, %v184
    %v223 = vpack.c.b16 %v187, %v185
    %v224 = vpack.c.b16 %v190, %v188
    %v225 = vpack.c.b16 %v191, %v189
    %v226 = vpack.c.b16 %v194, %v192
    %v227 = vpack.c.b16 %v195, %v193
    %260 = vmatprep.subr.bf16.mxu0 %v197
    %261 = vmatpush1.bf16.msra.mxu0 %v196
    %262 = vmatprep.subr.bf16.mxu0 %v199
    %263 = vmatpush1.bf16.msra.mxu0 %v198
    %264 = vmatprep.subr.bf16.mxu0 %v201
    %265 = vmatpush1.bf16.msra.mxu0 %v200
    %266 = vmatprep.subr.bf16.mxu0 %v203
    %267 = vmatpush1.bf16.msra.mxu0 %v202
    %268 = vmatprep.subr.bf16.mxu0 %v205
    %269 = vmatpush1.bf16.msra.mxu0 %v204
    %270 = vmatprep.subr.bf16.mxu0 %v207
    %271 = vmatpush1.bf16.msra.mxu0 %v206
    %272 = vmatprep.subr.bf16.mxu0 %v209
    %273 = vmatpush1.bf16.msra.mxu0 %v208
    %274 = vmatprep.subr.bf16.mxu0 %v211
    %275 = vmatpush1.bf16.msra.mxu0 %v210
    %276 = vmatprep.subr.bf16.mxu0 %v213
    %277 = vmatpush1.bf16.msra.mxu0 %v212
    %278 = vmatprep.subr.bf16.mxu0 %v215
    %279 = vmatpush1.bf16.msra.mxu0 %v214
    %280 = vmatprep.subr.bf16.mxu0 %v217
    %281 = vmatpush1.bf16.msra.mxu0 %v216
    %282 = vmatprep.subr.bf16.mxu0 %v219
    %283 = vmatpush1.bf16.msra.mxu0 %v218
    %284 = vmatprep.subr.bf16.mxu0 %v221
    %285 = vmatpush1.bf16.msra.mxu0 %v220
    %286 = vmatprep.subr.bf16.mxu0 %v223
    %287 = vmatpush1.bf16.msra.mxu0 %v222
    %288 = vmatprep.subr.bf16.mxu0 %v225
    %289 = vmatpush1.bf16.msra.mxu0 %v224
    %290 = vmatprep.subr.bf16.mxu0 %v227
    %291 = vmatpush1.bf16.msra.mxu0 %v226
    %292 = vmatprep.mubr.bf16.mxu0 %v67
    %293 = vmatmul.mubr.bf16.gmra.mrb[0].mxu0 %v66
    %v294 = vpop.f32.mrb[0].mxu0
    %v295 = vadd.f32 0.0, %v294
    %v296 = vpop.f32.mrb[0].mxu0
    %v297 = vadd.f32 0.0, %v296
    %v298 = vpop.f32.mrb[0].mxu0
    %v299 = vpop.f32.mrb[0].mxu0
    %300 = vdwg.mxu0
    %v301 = vrot.slane %v295, 4
    %v302 = vadd.f32 %v295, %v301
    %v303 = vrot.slane %v302, 2
    %v304 = vadd.f32 %v302, %v303
    %v305 = vrot.slane %v304, 1
    %v306 = vadd.f32 %v304, %v305
    %v307 = vrot.slane %v297, 4
    %v308 = vadd.f32 %v297, %v307
    %v309 = vrot.slane %v308, 2
    %v310 = vadd.f32 %v308, %v309
    %v311 = vrot.slane %v310, 1
    %v312 = vadd.f32 %v310, %v311
    %v313 = vmul.f32 %v306, 0.125
    %v314 = vmul.f32 %v312, 0.125
    %v315 = vsub.f32 %v295, %v313
    %v316 = vsub.f32 %v297, %v314
    %v317 = vmul.f32 %v315, %v315
    %v318 = vmul.f32 %v316, %v316
    %v319 = vrot.slane %v317, 4
    %v320 = vadd.f32 %v317, %v319
    %v321 = vrot.slane %v320, 2
    %v322 = vadd.f32 %v320, %v321
    %v323 = vrot.slane %v322, 1
    %v324 = vadd.f32 %v322, %v323
    %v325 = vrot.slane %v318, 4
    %v326 = vadd.f32 %v318, %v325
    %v327 = vrot.slane %v326, 2
    %v328 = vadd.f32 %v326, %v327
    %v329 = vrot.slane %v328, 1
    %v330 = vadd.f32 %v328, %v329
    %v331 = vmul.f32 %v324, 0.125
    %v332 = vmul.f32 %v330, 0.125
    %v333 = vld [vmem:[%s3] ss:$4 sm:$0x3]
    %v334 = vadd.f32 %v331, 1e-05
    %v335 = vadd.f32 %v332, 1e-05
    %v336 = vrsqrt.pop %v334
    %v337 = vrsqrt.pop %v335
    %v340 = vcombine.low %v336, %v337
    %v342 = vunpack.c.l.s4 1966171168
    %v343 = vunpack.c.0.s8 %v342
    %v344 = vlaneseq
    %v345 = vshrl.u32 %v344, 7
    %v346 = vsub.s32 %v343, %v345
    %v347 = vrot.slane %v340, %v346
    %v349 = vunpack.c.l.s4 1966171168
    %v350 = vunpack.c.0.s8 %v349
    %v351 = vlaneseq
    %v352 = vshrl.u32 %v351, 7
    %v353 = vsub.s32 %v350, %v352
    %v354 = vrot.slane %v347, %v353
    %v356 = vmul.f32 %v333, %v354
    %v358 = vlaneseq
    %v359 = vshrl.u32 %v358, 7
    %v360 = vsub.s32 0, %v359
    %v361 = vrot.slane %v356, %v360
    %v362 = vlaneseq
    %v363 = vshrl.u32 %v362, 7
    %v364 = vsub.s32 1, %v363
    %v365 = vrot.slane %v356, %v364
    %v368 = vmul.f32 %v315, %v361
    %v369 = vmul.f32 %v316, %v365
    %s370 = scalar_lea.vmem %s3, 1
    %v371 = vld [vmem:[%s370] ss:$4 sm:$0x3]
    %v373 = vlaneseq
    %v374 = vshrl.u32 %v373, 7
    %v375 = vsub.s32 0, %v374
    %v376 = vrot.slane %v371, %v375
    %v377 = vlaneseq
    %v378 = vshrl.u32 %v377, 7
    %v379 = vsub.s32 1, %v378
    %v380 = vrot.slane %v371, %v379
    %v383 = vadd.f32 %v368, %v376
    %v384 = vadd.f32 %v369, %v380
    %v385 = vxor.u32 %v383, 2147483648
    %v386 = vxor.u32 %v384, 2147483648
    %v387 = vmul.f32 %v385, 1.442695
    %v388 = vpow.pop %v387
    %v389 = vmul.f32 %v386, 1.442695
    %v390 = vpow.pop %v389
    %v391 = vadd.f32 %v388, 1.0
    %v392 = vadd.f32 %v390, 1.0
    %v393 = vrcp.pop %v391
    %v394 = vmul.f32 1.0, %v393
    %v395 = vrcp.pop %v392
    %v396 = vmul.f32 1.0, %v395
    %v397 = vmul.f32 %v383, %v394
    %v398 = vmul.f32 %v384, %v396
    %s399 = smul.u32 4, 32
    %s400 = smul.u32 %s399, 2
    %s401 = sshll.u32 %s400, 4
    %402 = dma.done [#allocation3], %s401
    %v403 = vpack.c.bf16 %v397, %v397
    %v404 = vpack.c.bf16 %v398, %v398
    %v405 = vld [vmem:[#allocation2] sm:$0xff]
    %v406 = vld [vmem:[#allocation2 + $0x8] sm:$0xff]
    %v407 = vld [vmem:[#allocation2 + $0x10] sm:$0xff]
    %v408 = vld [vmem:[#allocation2 + $0x18] sm:$0xff]
    %v409 = vld [vmem:[#allocation2 + $0x20] sm:$0xff]
    %v410 = vld [vmem:[#allocation2 + $0x28] sm:$0xff]
    %v411 = vld [vmem:[#allocation2 + $0x30] sm:$0xff]
    %v412 = vld [vmem:[#allocation2 + $0x38] sm:$0xff]
    %v413 = vld [vmem:[#allocation2 + $0x40] sm:$0xff]
    %v414 = vld [vmem:[#allocation2 + $0x48] sm:$0xff]
    %v415 = vld [vmem:[#allocation2 + $0x50] sm:$0xff]
    %v416 = vld [vmem:[#allocation2 + $0x58] sm:$0xff]
    %v417 = vld [vmem:[#allocation2 + $0x60] sm:$0xff]
    %v418 = vld [vmem:[#allocation2 + $0x68] sm:$0xff]
    %v419 = vld [vmem:[#allocation2 + $0x70] sm:$0xff]
    %v420 = vld [vmem:[#allocation2 + $0x78] sm:$0xff]
    %v421 = vld [vmem:[#allocation2 + $0x80] sm:$0xff]
    %v422 = vld [vmem:[#allocation2 + $0x88] sm:$0xff]
    %v423 = vld [vmem:[#allocation2 + $0x90] sm:$0xff]
    %v424 = vld [vmem:[#allocation2 + $0x98] sm:$0xff]
    %v425 = vld [vmem:[#allocation2 + $0xa0] sm:$0xff]
    %v426 = vld [vmem:[#allocation2 + $0xa8] sm:$0xff]
    %v427 = vld [vmem:[#allocation2 + $0xb0] sm:$0xff]
    %v428 = vld [vmem:[#allocation2 + $0xb8] sm:$0xff]
    %v429 = vld [vmem:[#allocation2 + $0xc0] sm:$0xff]
    %v430 = vld [vmem:[#allocation2 + $0xc8] sm:$0xff]
    %v431 = vld [vmem:[#allocation2 + $0xd0] sm:$0xff]
    %v432 = vld [vmem:[#allocation2 + $0xd8] sm:$0xff]
    %v433 = vld [vmem:[#allocation2 + $0xe0] sm:$0xff]
    %v434 = vld [vmem:[#allocation2 + $0xe8] sm:$0xff]
    %v435 = vld [vmem:[#allocation2 + $0xf0] sm:$0xff]
    %v436 = vld [vmem:[#allocation2 + $0xf8] sm:$0xff]
    %s437 = scalar_lea.vmem %s3, 2
    %v438 = vld [vmem:[%s437] ss:$4 sm:$0x3]
    %v440 = vlaneseq
    %v441 = vshrl.u32 %v440, 7
    %v442 = vsub.s32 0, %v441
    %v443 = vrot.slane %v438, %v442
    %v444 = vlaneseq
    %v445 = vshrl.u32 %v444, 7
    %v446 = vsub.s32 1, %v445
    %v447 = vrot.slane %v438, %v446
    %450 = vmatprep.subr.bf16.mxu0 %v406
    %451 = vmatpush1.bf16.msra.mxu0 %v405
    %452 = vmatprep.subr.bf16.mxu0 %v408
    %453 = vmatpush1.bf16.msra.mxu0 %v407
    %454 = vmatprep.subr.bf16.mxu0 %v410
    %455 = vmatpush1.bf16.msra.mxu0 %v409
    %456 = vmatprep.subr.bf16.mxu0 %v412
    %457 = vmatpush1.bf16.msra.mxu0 %v411
    %458 = vmatprep.subr.bf16.mxu0 %v414
    %459 = vmatpush1.bf16.msra.mxu0 %v413
    %460 = vmatprep.subr.bf16.mxu0 %v416
    %461 = vmatpush1.bf16.msra.mxu0 %v415
    %462 = vmatprep.subr.bf16.mxu0 %v418
    %463 = vmatpush1.bf16.msra.mxu0 %v417
    %464 = vmatprep.subr.bf16.mxu0 %v420
    %465 = vmatpush1.bf16.msra.mxu0 %v419
    %466 = vmatprep.subr.bf16.mxu0 %v422
    %467 = vmatpush1.bf16.msra.mxu0 %v421
    %468 = vmatprep.subr.bf16.mxu0 %v424
    %469 = vmatpush1.bf16.msra.mxu0 %v423
    %470 = vmatprep.subr.bf16.mxu0 %v426
    %471 = vmatpush1.bf16.msra.mxu0 %v425
    %472 = vmatprep.subr.bf16.mxu0 %v428
    %473 = vmatpush1.bf16.msra.mxu0 %v427
    %474 = vmatprep.subr.bf16.mxu0 %v430
    %475 = vmatpush1.bf16.msra.mxu0 %v429
    %476 = vmatprep.subr.bf16.mxu0 %v432
    %477 = vmatpush1.bf16.msra.mxu0 %v431
    %478 = vmatprep.subr.bf16.mxu0 %v434
    %479 = vmatpush1.bf16.msra.mxu0 %v433
    %480 = vmatprep.subr.bf16.mxu0 %v436
    %481 = vmatpush1.bf16.msra.mxu0 %v435
    %482 = vmatprep.mubr.bf16.mxu0 %v404
    %483 = vmatmul.mubr.bf16.gmra.mrb[0].mxu0 %v403
    %v484 = vpop.f32.mrb[0].mxu0
    %v485 = vadd.f32 %v443, %v484
    %v486 = vpop.f32.mrb[0].mxu0
    %v487 = vadd.f32 %v447, %v486
    %v488 = vpop.f32.mrb[0].mxu0
    %v489 = vpop.f32.mrb[0].mxu0
    %490 = vdwg.mxu0
    %v491 = vadd.f32 %v64, %v485
    %v492 = vadd.f32 %v65, %v487
    %493 = vst [vmem:[%s4] sm:$0xff] %v491
    %494 = vst [vmem:[%s4 + $0x8] sm:$0xff] %v492
    // Predicated region
    $region18: #{cross_channel_skip_fc.1} parent=1 // pred_check
      _
    $region19: #{cross_channel_skip_fc.1} parent=1 // pred_check_branch
      %496 = sbr.rel (0) target = $region21
    $region20: #{cross_channel_skip_fc.1} parent=1 // pred_region
      _
    $region21: #{cross_channel_skip_fc.1} parent=1 // pred_fallthru
      _
    // Predicated region
    $region22: #{cross_channel_skip_fc.1} parent=1 // pred_check
      _
    $region23: #{cross_channel_skip_fc.1} parent=1 // pred_check_branch
      %498 = sbr.rel (0) target = $region25
    $region24: #{cross_channel_skip_fc.1} parent=1 // pred_region
      _
    $region25: #{cross_channel_skip_fc.1} parent=1 // pred_fallthru
      _
    %499 = vsyncpa [#allocation5], 1
  %500 = vsyncmov [#allocation3]
  %s501 = vpop.sfrf %500
  %p502 = scmp.eq.s32.totalorder %s501, 0
  %p503 = pneg %p502
  %505 = shalt.err (%p503)

</llo_original>
